<compile_context>
chip_gen: v6e
topology: v6e:2x2x1
jax: 0.10.0
libtpu: 0.0.40
codegen_flags: <defaults>
</compile_context>

<pallas_src>
import jax
import jax.numpy as jnp
import numpy as np
from jax.experimental import pallas as pl
from jax.experimental.pallas import tpu as pltpu

LANE = 128
SUBLANE = 8


def _round_up(n, m):
    return ((n + m - 1) // m) * m


def make_rnn_kernel(T, Bp, Dp, Wp):
    def kernel(x_ref, w_ref, s_ref, out_ref):
        # Static, sublane-aligned slices of the packed weight slab (loaded once).
        w_ih = w_ref[0:Dp, :]                      # (Dp, Wp)  = W_ih^T, zero-padded
        w_hh = w_ref[Dp:Dp + Wp, :]                # (Wp, Wp)  = W_hh^T  (16 vregs @128)
        w_fc = w_ref[Dp + Wp:Dp + 2 * Wp, :]       # (Wp, Wp)  = W_fc^T, zero-padded

        # Small slab: rows [0:Bp] = h0, row Bp = (b_ih + b_hh), row Bp+1 = b_fc.
        bias = s_ref[Bp:Bp + 1, :]                 # (1, Wp)   one-time sub-tile read
        b_fc = s_ref[Bp + 1:Bp + 2, :]             # (1, Wp)

        # Hoisted input projection: ONE tile-aligned (T*Bp, Dp) @ (Dp, Wp) MXU matmul
        # with the two RNN biases folded in once.
        p = jnp.dot(x_ref[...], w_ih, preferred_element_type=jnp.float32) + bias

        h = s_ref[0:Bp, :]                         # (Bp, Wp) == one full (8,128) tile

        # Fully-unrolled recurrence (T small & static). Each step's slab is a whole
        # (8,128) tile (Bp rows, start aligned to 8) -> free vreg pick, and the step
        # is matmul-accumulate-into-p_t then relu (MRB-friendly on v7x).
        # TODO(synk): switch to lax.fori_loop(unroll=True) / a time-chunked grid with
        #             an h scratch carry if T ever grows beyond ~16.
        for t in range(T):
            p_t = p[t * Bp:(t + 1) * Bp, :]
            h = jnp.maximum(
                jnp.dot(h, w_hh, preferred_element_type=jnp.float32) + p_t, 0.0)

        # Fully-connected head on the final hidden state; lane-dense full-tile store.
        out_ref[...] = (
            jnp.dot(h, w_fc, preferred_element_type=jnp.float32) + b_fc
        )

    return kernel


def rnn_forward(x, h0, w_ih, b_ih, w_hh, b_hh, w_fc, b_fc):
    """x: (B, T, D) float32; returns (B, O) float32 — matches nn.RNN(relu) + Linear."""
    B, T, D = x.shape
    H = w_hh.shape[0]
    O = w_fc.shape[0]
    Bp = _round_up(B, SUBLANE)          # pad batch to sublane width -> tile-aligned slabs
    Dp = _round_up(D, SUBLANE)          # pad features so the big matmul is tile-aligned
    Hp = _round_up(H, LANE)
    Op = _round_up(O, LANE)
    Wp = max(Hp, Op)                    # common lane width for h / fc output (128 here)

    # Time-major, batch- and feature-padded input: row t*Bp + b <-> x[b, t, :].
    x_tm = jnp.transpose(x, (1, 0, 2))                          # (T, B, D)
    x_tm = jnp.pad(x_tm, ((0, 0), (0, Bp - B), (0, Dp - D)))    # (T, Bp, Dp)
    x_flat = x_tm.reshape(T * Bp, Dp)

    # Packed weight slab: [0:Dp]=W_ih^T, [Dp:Dp+Wp]=W_hh^T, [Dp+Wp:]=W_fc^T (zero-padded).
    w_ih_p = jnp.pad(w_ih.T, ((0, Dp - D), (0, Wp - H)))        # (Dp, Wp)
    w_hh_p = jnp.pad(w_hh.T, ((0, Wp - H), (0, Wp - H)))        # (Wp, Wp)
    w_fc_p = jnp.pad(w_fc.T, ((0, Wp - H), (0, Wp - O)))        # (Wp, Wp)
    w_stack = jnp.concatenate([w_ih_p, w_hh_p, w_fc_p], axis=0)  # (Dp + 2*Wp, Wp)

    # Packed small slab: rows [0:Bp]=h0, row Bp = b_ih+b_hh (folded), row Bp+1 = b_fc.
    h0_p = jnp.pad(h0, ((0, Bp - B), (0, Wp - H)))                        # (Bp, Wp)
    bias_p = jnp.pad((b_ih + b_hh).reshape(1, H), ((0, 0), (0, Wp - H)))  # (1, Wp)
    b_fc_p = jnp.pad(b_fc.reshape(1, O), ((0, 0), (0, Wp - O)))           # (1, Wp)
    small = jnp.concatenate([h0_p, bias_p, b_fc_p], axis=0)               # (Bp+2, Wp)
    small = jnp.pad(small, ((0, _round_up(Bp + 2, SUBLANE) - (Bp + 2)), (0, 0)))
    # Padded hidden lanes / batch rows / feature rows stay exactly zero or are sliced
    # off below, so the math in the valid region is unchanged.

    out_p = pl.pallas_call(
        make_rnn_kernel(T, Bp, Dp, Wp),
        out_shape=jax.ShapeDtypeStruct((Bp, Wp), jnp.float32),
        in_specs=[pl.BlockSpec(memory_space=pltpu.MemorySpace.VMEM)] * 3,
        out_specs=pl.BlockSpec(memory_space=pltpu.MemorySpace.VMEM),
    )(x_flat, w_stack, small)

    return out_p[:B, :O]


def rnn_reference(x, h0, w_ih, b_ih, w_hh, b_hh, w_fc, b_fc):
    """Pure-JAX reference matching PyTorch nn.RNN(relu) + Linear on h_n."""
    h = h0
    for t in range(x.shape[1]):
        pre = x[:, t, :] @ w_ih.T + b_ih + h @ w_hh.T + b_hh
        h = jnp.maximum(pre, 0.0)
    return h @ w_fc.T + b_fc


if __name__ == "__main__":
    # Shapes implied by the module:
    #   input_dim = 1 + cov_dim = 4, steps (T) = 8, hidden_size = 32, H (output) = 4
    B, T, D, HID, OUT = 2, 8, 4, 32, 4

    key = jax.random.PRNGKey(0)
    kx, kh0, k1, k2, k3, k4, k5, k6 = jax.random.split(key, 8)

    # Deterministic parameter init (PyTorch-like uniform(-1/sqrt(H), 1/sqrt(H))).
    bound = 1.0 / np.sqrt(HID)
    w_ih = jax.random.uniform(k1, (HID, D), jnp.float32, -bound, bound)
    b_ih = jax.random.uniform(k2, (HID,), jnp.float32, -bound, bound)
    w_hh = jax.random.uniform(k3, (HID, HID), jnp.float32, -bound, bound)
    b_hh = jax.random.uniform(k4, (HID,), jnp.float32, -bound, bound)
    w_fc = jax.random.uniform(k5, (OUT, HID), jnp.float32, -bound, bound)
    b_fc = jax.random.uniform(k6, (OUT,), jnp.float32, -bound, bound)

    # Input batch and deterministic h0 (stand-in for per-forward nn.init.normal_(std=0.015)).
    x = jax.random.normal(kx, (B, T, D), jnp.float32)
    h0 = 0.015 * jax.random.normal(kh0, (B, HID), jnp.float32)

    out = rnn_forward(x, h0, w_ih, b_ih, w_hh, b_hh, w_fc, b_fc)
    out = jax.block_until_ready(out)

    ref = rnn_reference(x, h0, w_ih, b_ih, w_hh, b_hh, w_fc, b_fc)
    np.testing.assert_allclose(np.asarray(out), np.asarray(ref), rtol=1e-5, atol=1e-5)

    print("KERNEL_OK")
</pallas_src>

<mosaic_0001>
module attributes {stable_mosaic.version = 11 : i64} {
  func.func @kernel(%arg0: memref<64x8xf32, #tpu.memory_space<vmem>>, %arg1: memref<264x128xf32, #tpu.memory_space<vmem>>, %arg2: memref<16x128xf32, #tpu.memory_space<vmem>>, %arg3: memref<8x128xf32, #tpu.memory_space<vmem>>) attributes {dimension_semantics = [], scalar_prefetch = 0 : i64, scratch_operands = 0 : i64, tpu.core_type = #tpu.core_type<tc>} {
    %c0 = arith.constant 0 : index
    %c0_0 = arith.constant 0 : index
    %0 = vector.load %arg1[%c0, %c0_0] : memref<264x128xf32, #tpu.memory_space<vmem>>, vector<8x128xf32>
    %c8 = arith.constant 8 : index
    %c0_1 = arith.constant 0 : index
    %1 = vector.load %arg1[%c8, %c0_1] : memref<264x128xf32, #tpu.memory_space<vmem>>, vector<128x128xf32>
    %c136 = arith.constant 136 : index
    %c0_2 = arith.constant 0 : index
    %2 = vector.load %arg1[%c136, %c0_2] : memref<264x128xf32, #tpu.memory_space<vmem>>, vector<128x128xf32>
    %c8_3 = arith.constant 8 : index
    %c0_4 = arith.constant 0 : index
    %3 = vector.load %arg2[%c8_3, %c0_4] : memref<16x128xf32, #tpu.memory_space<vmem>>, vector<1x128xf32>
    %c9 = arith.constant 9 : index
    %c0_5 = arith.constant 0 : index
    %4 = vector.load %arg2[%c9, %c0_5] : memref<16x128xf32, #tpu.memory_space<vmem>>, vector<1x128xf32>
    %c0_6 = arith.constant 0 : index
    %c0_7 = arith.constant 0 : index
    %5 = vector.load %arg0[%c0_6, %c0_7] : memref<64x8xf32, #tpu.memory_space<vmem>>, vector<64x8xf32>
    %cst = arith.constant dense<0.000000e+00> : vector<64x128xf32>
    %6 = tpu.matmul %5, %0, %cst {dimension_numbers = #tpu.dot_dimension_numbers<[1], [0], [0], [1], [0, 0, 1, 1], [], []>} : vector<64x8xf32>, vector<8x128xf32>, vector<64x128xf32> -> vector<64x128xf32>
    %7 = vector.broadcast %3 : vector<1x128xf32> to vector<64x128xf32>
    %8 = arith.addf %6, %7 : vector<64x128xf32>
    %c0_8 = arith.constant 0 : index
    %c0_9 = arith.constant 0 : index
    %9 = vector.load %arg2[%c0_8, %c0_9] : memref<16x128xf32, #tpu.memory_space<vmem>>, vector<8x128xf32>
    %10 = vector.extract_strided_slice %8 {offsets = [0, 0], sizes = [8, 128], strides = [1, 1]} : vector<64x128xf32> to vector<8x128xf32>
    %cst_10 = arith.constant dense<0.000000e+00> : vector<8x128xf32>
    %11 = tpu.matmul %9, %1, %cst_10 {dimension_numbers = #tpu.dot_dimension_numbers<[1], [0], [0], [1], [0, 0, 1, 1], [], []>} : vector<8x128xf32>, vector<128x128xf32>, vector<8x128xf32> -> vector<8x128xf32>
    %12 = arith.addf %11, %10 : vector<8x128xf32>
    %cst_11 = arith.constant 0.000000e+00 : f32
    %13 = vector.broadcast %cst_11 : f32 to vector<8x128xf32>
    %14 = arith.maximumf %12, %13 : vector<8x128xf32>
    %15 = vector.extract_strided_slice %8 {offsets = [8, 0], sizes = [8, 128], strides = [1, 1]} : vector<64x128xf32> to vector<8x128xf32>
    %cst_12 = arith.constant dense<0.000000e+00> : vector<8x128xf32>
    %16 = tpu.matmul %14, %1, %cst_12 {dimension_numbers = #tpu.dot_dimension_numbers<[1], [0], [0], [1], [0, 0, 1, 1], [], []>} : vector<8x128xf32>, vector<128x128xf32>, vector<8x128xf32> -> vector<8x128xf32>
    %17 = arith.addf %16, %15 : vector<8x128xf32>
    %cst_13 = arith.constant 0.000000e+00 : f32
    %18 = vector.broadcast %cst_13 : f32 to vector<8x128xf32>
    %19 = arith.maximumf %17, %18 : vector<8x128xf32>
    %20 = vector.extract_strided_slice %8 {offsets = [16, 0], sizes = [8, 128], strides = [1, 1]} : vector<64x128xf32> to vector<8x128xf32>
    %cst_14 = arith.constant dense<0.000000e+00> : vector<8x128xf32>
    %21 = tpu.matmul %19, %1, %cst_14 {dimension_numbers = #tpu.dot_dimension_numbers<[1], [0], [0], [1], [0, 0, 1, 1], [], []>} : vector<8x128xf32>, vector<128x128xf32>, vector<8x128xf32> -> vector<8x128xf32>
    %22 = arith.addf %21, %20 : vector<8x128xf32>
    %cst_15 = arith.constant 0.000000e+00 : f32
    %23 = vector.broadcast %cst_15 : f32 to vector<8x128xf32>
    %24 = arith.maximumf %22, %23 : vector<8x128xf32>
    %25 = vector.extract_strided_slice %8 {offsets = [24, 0], sizes = [8, 128], strides = [1, 1]} : vector<64x128xf32> to vector<8x128xf32>
    %cst_16 = arith.constant dense<0.000000e+00> : vector<8x128xf32>
    %26 = tpu.matmul %24, %1, %cst_16 {dimension_numbers = #tpu.dot_dimension_numbers<[1], [0], [0], [1], [0, 0, 1, 1], [], []>} : vector<8x128xf32>, vector<128x128xf32>, vector<8x128xf32> -> vector<8x128xf32>
    %27 = arith.addf %26, %25 : vector<8x128xf32>
    %cst_17 = arith.constant 0.000000e+00 : f32
    %28 = vector.broadcast %cst_17 : f32 to vector<8x128xf32>
    %29 = arith.maximumf %27, %28 : vector<8x128xf32>
    %30 = vector.extract_strided_slice %8 {offsets = [32, 0], sizes = [8, 128], strides = [1, 1]} : vector<64x128xf32> to vector<8x128xf32>
    %cst_18 = arith.constant dense<0.000000e+00> : vector<8x128xf32>
    %31 = tpu.matmul %29, %1, %cst_18 {dimension_numbers = #tpu.dot_dimension_numbers<[1], [0], [0], [1], [0, 0, 1, 1], [], []>} : vector<8x128xf32>, vector<128x128xf32>, vector<8x128xf32> -> vector<8x128xf32>
    %32 = arith.addf %31, %30 : vector<8x128xf32>
    %cst_19 = arith.constant 0.000000e+00 : f32
    %33 = vector.broadcast %cst_19 : f32 to vector<8x128xf32>
    %34 = arith.maximumf %32, %33 : vector<8x128xf32>
    %35 = vector.extract_strided_slice %8 {offsets = [40, 0], sizes = [8, 128], strides = [1, 1]} : vector<64x128xf32> to vector<8x128xf32>
    %cst_20 = arith.constant dense<0.000000e+00> : vector<8x128xf32>
    %36 = tpu.matmul %34, %1, %cst_20 {dimension_numbers = #tpu.dot_dimension_numbers<[1], [0], [0], [1], [0, 0, 1, 1], [], []>} : vector<8x128xf32>, vector<128x128xf32>, vector<8x128xf32> -> vector<8x128xf32>
    %37 = arith.addf %36, %35 : vector<8x128xf32>
    %cst_21 = arith.constant 0.000000e+00 : f32
    %38 = vector.broadcast %cst_21 : f32 to vector<8x128xf32>
    %39 = arith.maximumf %37, %38 : vector<8x128xf32>
    %40 = vector.extract_strided_slice %8 {offsets = [48, 0], sizes = [8, 128], strides = [1, 1]} : vector<64x128xf32> to vector<8x128xf32>
    %cst_22 = arith.constant dense<0.000000e+00> : vector<8x128xf32>
    %41 = tpu.matmul %39, %1, %cst_22 {dimension_numbers = #tpu.dot_dimension_numbers<[1], [0], [0], [1], [0, 0, 1, 1], [], []>} : vector<8x128xf32>, vector<128x128xf32>, vector<8x128xf32> -> vector<8x128xf32>
    %42 = arith.addf %41, %40 : vector<8x128xf32>
    %cst_23 = arith.constant 0.000000e+00 : f32
    %43 = vector.broadcast %cst_23 : f32 to vector<8x128xf32>
    %44 = arith.maximumf %42, %43 : vector<8x128xf32>
    %45 = vector.extract_strided_slice %8 {offsets = [56, 0], sizes = [8, 128], strides = [1, 1]} : vector<64x128xf32> to vector<8x128xf32>
    %cst_24 = arith.constant dense<0.000000e+00> : vector<8x128xf32>
    %46 = tpu.matmul %44, %1, %cst_24 {dimension_numbers = #tpu.dot_dimension_numbers<[1], [0], [0], [1], [0, 0, 1, 1], [], []>} : vector<8x128xf32>, vector<128x128xf32>, vector<8x128xf32> -> vector<8x128xf32>
    %47 = arith.addf %46, %45 : vector<8x128xf32>
    %cst_25 = arith.constant 0.000000e+00 : f32
    %48 = vector.broadcast %cst_25 : f32 to vector<8x128xf32>
    %49 = arith.maximumf %47, %48 : vector<8x128xf32>
    %cst_26 = arith.constant dense<0.000000e+00> : vector<8x128xf32>
    %50 = tpu.matmul %49, %2, %cst_26 {dimension_numbers = #tpu.dot_dimension_numbers<[1], [0], [0], [1], [0, 0, 1, 1], [], []>} : vector<8x128xf32>, vector<128x128xf32>, vector<8x128xf32> -> vector<8x128xf32>
    %51 = vector.broadcast %4 : vector<1x128xf32> to vector<8x128xf32>
    %52 = arith.addf %50, %51 : vector<8x128xf32>
    %c0_27 = arith.constant 0 : index
    %c0_28 = arith.constant 0 : index
    %53 = vector.load %arg3[%c0_27, %c0_28] : memref<8x128xf32, #tpu.memory_space<vmem>>, vector<8x128xf32>
    tpu.vector_store %arg3[%c0_27, %c0_28], %52 {strides = array<i32>} : memref<8x128xf32, #tpu.memory_space<vmem>>, vector<8x128xf32>,
    return
  }
}

</mosaic_0001>

<llo_original>
// kernel: tpu_custom_call.1
$region0: #{tpu_custom_call.1}
  #allocation0 [shape = 'u32[]', space=smem, size = 0x4, offset = 0x4, fixed_abs, tag = 'smem constant byte address 0x4 - core index']
  #allocation1 [shape = 'u32[144,128]{1,0:T(1,128)}', space=vmem, size = 0x12000, scoped, tag = 'internal scratch']
  %s0 = inlined_call_operand.vmem [shape: f32[64,8], index: 0, kind: input, shape index: {}]
  %s1 = inlined_call_operand.hbm [shape: f32[264,128], index: 1, kind: input, shape index: {}]
  %s2 = inlined_call_operand.vmem [shape: f32[16,128], index: 2, kind: input, shape index: {}]
  %s3 = inlined_call_operand.hbm [shape: f32[8,128], index: 3, kind: output, shape index: {}]
  %s4 = sld [smem:[#allocation0]]
  $region26: #{tpu_custom_call.1} parent=0
    _
  %s6 = ssub.s32 1, %s4
  %s7 = scalar_select 0, %s6, %s4
  $region1: #{tpu_custom_call.1} parent=0
    #allocation2 [shape = 'u8[135168]{0}', space=vmem, size = 0x21000, scoped, tag = 'input window, operand 1, single buffered']
    #allocation3 [shape = 's32[1]{0}', space=sflag, size = 0x4, scoped, tag = 'scoped memory for tpu_custom_call.1']
    #allocation4 [shape = 's32[1]{0}', space=sflag, size = 0x4, scoped, tag = 'scoped memory for tpu_custom_call.1']
    #allocation5 [shape = 'u8[4096]{0}', space=vmem, size = 0x1000, scoped, tag = 'output window, operand 0, single buffered']
    %8 = vsyncpa [#allocation3], 0
    %9 = vsyncpa [#allocation4], 0
    // Predicated region
    $region2: #{tpu_custom_call.1} parent=1 // pred_check
      _
    $region3: #{tpu_custom_call.1} parent=1 // pred_check_branch
      %11 = sbr.rel (0) target = $region5
    $region4: #{tpu_custom_call.1} parent=1 // pred_region
      _
    $region5: #{tpu_custom_call.1} parent=1 // pred_fallthru
      _
    // Predicated region
    $region6: #{tpu_custom_call.1} parent=1 // pred_check
      _
    $region7: #{tpu_custom_call.1} parent=1 // pred_check_branch
      %13 = sbr.rel (0) target = $region9
    $region8: #{tpu_custom_call.1} parent=1 // pred_region
      %s15 = ssub.s32 4224, 4224
      %16 = vsyncadd [#allocation3], %s15
      %s17 = sshll.u32 [#allocation2], 4
      %s18 = int_to_ptr.vmem [resolvable:$true] %s17
      %23 = dma.hbm_to_vmem [thread:$0]  %s1, 4224, %s18, [#allocation3], 128, 128, 8
    $region9: #{tpu_custom_call.1} parent=1 // pred_fallthru
      _
    // Predicated region
    $region10: #{tpu_custom_call.1} parent=1 // pred_check
      _
    $region11: #{tpu_custom_call.1} parent=1 // pred_check_branch
      %25 = sbr.rel (0) target = $region13
    $region12: #{tpu_custom_call.1} parent=1 // pred_region
      _
    $region13: #{tpu_custom_call.1} parent=1 // pred_fallthru
      _
    // Predicated region
    $region14: #{tpu_custom_call.1} parent=1 // pred_check
      _
    $region15: #{tpu_custom_call.1} parent=1 // pred_check_branch
      %27 = sbr.rel (0) target = $region17
    $region16: #{tpu_custom_call.1} parent=1 // pred_region
      %28 = dma.done [#allocation3], 4224
    $region17: #{tpu_custom_call.1} parent=1 // pred_fallthru
      _
    %v29 = vld [vmem:[#allocation2] sm:$0xff]
    %v30 = vld [vmem:[#allocation2 + $0x8] sm:$0xff]
    %v31 = vld [vmem:[#allocation2 + $0x10] sm:$0xff]
    %v32 = vld [vmem:[#allocation2 + $0x18] sm:$0xff]
    %v33 = vld [vmem:[#allocation2 + $0x20] sm:$0xff]
    %v34 = vld [vmem:[#allocation2 + $0x28] sm:$0xff]
    %v35 = vld [vmem:[#allocation2 + $0x30] sm:$0xff]
    %v36 = vld [vmem:[#allocation2 + $0x38] sm:$0xff]
    %v37 = vld [vmem:[#allocation2 + $0x40] sm:$0xff]
    %v38 = vld [vmem:[#allocation2 + $0x48] sm:$0xff]
    %v39 = vld [vmem:[#allocation2 + $0x50] sm:$0xff]
    %v40 = vld [vmem:[#allocation2 + $0x58] sm:$0xff]
    %v41 = vld [vmem:[#allocation2 + $0x60] sm:$0xff]
    %v42 = vld [vmem:[#allocation2 + $0x68] sm:$0xff]
    %v43 = vld [vmem:[#allocation2 + $0x70] sm:$0xff]
    %v44 = vld [vmem:[#allocation2 + $0x78] sm:$0xff]
    %v45 = vld [vmem:[#allocation2 + $0x80] sm:$0xff]
    %v46 = vld [vmem:[#allocation2 + $0x88] sm:$0xff]
    %v47 = vld [vmem:[#allocation2 + $0x90] sm:$0xff]
    %v48 = vld [vmem:[#allocation2 + $0x98] sm:$0xff]
    %v49 = vld [vmem:[#allocation2 + $0xa0] sm:$0xff]
    %v50 = vld [vmem:[#allocation2 + $0xa8] sm:$0xff]
    %v51 = vld [vmem:[#allocation2 + $0xb0] sm:$0xff]
    %v52 = vld [vmem:[#allocation2 + $0xb8] sm:$0xff]
    %v53 = vld [vmem:[#allocation2 + $0xc0] sm:$0xff]
    %v54 = vld [vmem:[#allocation2 + $0xc8] sm:$0xff]
    %v55 = vld [vmem:[#allocation2 + $0xd0] sm:$0xff]
    %v56 = vld [vmem:[#allocation2 + $0xd8] sm:$0xff]
    %v57 = vld [vmem:[#allocation2 + $0xe0] sm:$0xff]
    %v58 = vld [vmem:[#allocation2 + $0xe8] sm:$0xff]
    %v59 = vld [vmem:[#allocation2 + $0xf0] sm:$0xff]
    %v60 = vld [vmem:[#allocation2 + $0xf8] sm:$0xff]
    %v61 = vld [vmem:[#allocation2 + $0x100] sm:$0xff]
    %v62 = vld [vmem:[%s2 + $0x8] sm:$0x1]
    %v63 = vld [vmem:[%s2 + $0x9] sm:$0x1]
    %v64 = vld [vmem:[%s0] sm:$0xff]
    %v65 = vld [vmem:[%s0 + $0x8] sm:$0xff]
    %v66 = vld [vmem:[%s0 + $0x10] sm:$0xff]
    %v67 = vld [vmem:[%s0 + $0x18] sm:$0xff]
    %v68 = vld [vmem:[%s0 + $0x20] sm:$0xff]
    %v69 = vld [vmem:[%s0 + $0x28] sm:$0xff]
    %v70 = vld [vmem:[%s0 + $0x30] sm:$0xff]
    %v71 = vld [vmem:[%s0 + $0x38] sm:$0xff]
    %v72 = vlaneseq
    %v73 = vshrl.u32 %v72, 7
    %v74 = vsub.s32 0, %v73
    %v75 = vrot.slane %v62, %v74
    %vm76 = vcmask 64512
    %v78 = vsel %vm76, %v64, 0
    %v81 = vsel %vm76, %v65, 0
    %v84 = vsel %vm76, %v66, 0
    %v87 = vsel %vm76, %v67, 0
    %v90 = vsel %vm76, %v68, 0
    %v93 = vsel %vm76, %v69, 0
    %v96 = vsel %vm76, %v70, 0
    %v99 = vsel %vm76, %v71, 0
    %101 = vmatprep.subr.mxu0 0.0
    %102 = vmatpush1.msra.mxu0 0.0
    %103 = vmatprep.subr.mxu0 0.0
    %104 = vmatpush1.msra.mxu0 0.0
    %105 = vmatprep.subr.mxu0 0.0
    %106 = vmatpush1.msra.mxu0 0.0
    %107 = vmatprep.subr.mxu0 0.0
    %108 = vmatpush1.msra.mxu0 0.0
    %109 = vmatprep.subr.mxu0 0.0
    %110 = vmatpush1.msra.mxu0 0.0
    %111 = vmatprep.subr.mxu0 0.0
    %112 = vmatpush1.msra.mxu0 0.0
    %113 = vmatprep.subr.mxu0 0.0
    %114 = vmatpush1.msra.mxu0 0.0
    %115 = vmatprep.subr.mxu0 0.0
    %116 = vmatpush1.msra.mxu0 0.0
    %117 = vmatprep.subr.mxu0 0.0
    %118 = vmatpush1.msra.mxu0 0.0
    %119 = vmatprep.subr.mxu0 0.0
    %120 = vmatpush1.msra.mxu0 0.0
    %121 = vmatprep.subr.mxu0 0.0
    %122 = vmatpush1.msra.mxu0 0.0
    %123 = vmatprep.subr.mxu0 0.0
    %124 = vmatpush1.msra.mxu0 0.0
    %125 = vmatprep.subr.mxu0 0.0
    %126 = vmatpush1.msra.mxu0 0.0
    %127 = vmatprep.subr.mxu0 0.0
    %128 = vmatpush1.msra.mxu0 0.0
    %129 = vmatprep.subr.mxu0 0.0
    %130 = vmatpush1.msra.mxu0 0.0
    %131 = vmatprep.subr.mxu0 0.0
    %132 = vmatpush1.msra.mxu0 %v29
    %133 = vmatprep.subr.mxu0 0.0
    %134 = vmatpush2.msra.mxu0 0.0
    %135 = vmatprep.subr.mxu0 0.0
    %136 = vmatpush2.msra.mxu0 0.0
    %137 = vmatprep.subr.mxu0 0.0
    %138 = vmatpush2.msra.mxu0 0.0
    %139 = vmatprep.subr.mxu0 0.0
    %140 = vmatpush2.msra.mxu0 0.0
    %141 = vmatprep.subr.mxu0 0.0
    %142 = vmatpush2.msra.mxu0 0.0
    %143 = vmatprep.subr.mxu0 0.0
    %144 = vmatpush2.msra.mxu0 0.0
    %145 = vmatprep.subr.mxu0 0.0
    %146 = vmatpush2.msra.mxu0 0.0
    %147 = vmatprep.subr.mxu0 0.0
    %148 = vmatpush2.msra.mxu0 0.0
    %149 = vmatprep.subr.mxu0 0.0
    %150 = vmatpush2.msra.mxu0 0.0
    %151 = vmatprep.subr.mxu0 0.0
    %152 = vmatpush2.msra.mxu0 0.0
    %153 = vmatprep.subr.mxu0 0.0
    %154 = vmatpush2.msra.mxu0 0.0
    %155 = vmatprep.subr.mxu0 0.0
    %156 = vmatpush2.msra.mxu0 0.0
    %157 = vmatprep.subr.mxu0 0.0
    %158 = vmatpush2.msra.mxu0 0.0
    %159 = vmatprep.subr.mxu0 0.0
    %160 = vmatpush2.msra.mxu0 0.0
    %161 = vmatprep.subr.mxu0 0.0
    %162 = vmatpush2.msra.mxu0 0.0
    %163 = vmatprep.subr.mxu0 0.0
    %164 = vmatpush2.msra.mxu0 0.0
    %165 = vmatprep.mubr.f32.mxu0 0.0
    %166 = vmatmul.mubr.f32.gmra.mxu0 %v78
    %v167 = vpop.f32.mrf.mxu0
    %v168 = vadd.f32 %v75, %v167
    %v169 = vpop.f32.mrf.mxu0
    %170 = vmatprep.mubr.f32.mxu0 0.0
    %171 = vmatmul.mubr.f32.gmra.mxu0 %v81
    %v172 = vpop.f32.mrf.mxu0
    %v173 = vadd.f32 %v75, %v172
    %v174 = vpop.f32.mrf.mxu0
    %175 = vmatprep.mubr.f32.mxu0 0.0
    %176 = vmatmul.mubr.f32.gmra.mxu0 %v84
    %v177 = vpop.f32.mrf.mxu0
    %v178 = vadd.f32 %v75, %v177
    %v179 = vpop.f32.mrf.mxu0
    %180 = vmatprep.mubr.f32.mxu0 0.0
    %181 = vmatmul.mubr.f32.gmra.mxu0 %v87
    %v182 = vpop.f32.mrf.mxu0
    %v183 = vadd.f32 %v75, %v182
    %v184 = vpop.f32.mrf.mxu0
    %185 = vmatprep.mubr.f32.mxu0 0.0
    %186 = vmatmul.mubr.f32.gmra.mxu0 %v90
    %v187 = vpop.f32.mrf.mxu0
    %v188 = vadd.f32 %v75, %v187
    %v189 = vpop.f32.mrf.mxu0
    %190 = vmatprep.mubr.f32.mxu0 0.0
    %191 = vmatmul.mubr.f32.gmra.mxu0 %v93
    %v192 = vpop.f32.mrf.mxu0
    %v193 = vadd.f32 %v75, %v192
    %v194 = vpop.f32.mrf.mxu0
    %195 = vmatprep.mubr.f32.mxu0 0.0
    %196 = vmatmul.mubr.f32.gmra.mxu0 %v96
    %v197 = vpop.f32.mrf.mxu0
    %v198 = vadd.f32 %v75, %v197
    %v199 = vpop.f32.mrf.mxu0
    %200 = vmatprep.mubr.f32.mxu0 0.0
    %201 = vmatmul.mubr.f32.gmra.mxu0 %v99
    %v202 = vpop.f32.mrf.mxu0
    %v203 = vadd.f32 %v75, %v202
    %v204 = vpop.f32.mrf.mxu0
    %205 = vdwg.mxu0
    %v206 = vld [vmem:[%s2] sm:$0xff]
    %207 = vmatprep.subr.mxu0 0.0
    %208 = vmatpush1.msra.mxu0 %v45
    %209 = vmatprep.subr.mxu0 0.0
    %210 = vmatpush1.msra.mxu0 %v44
    %211 = vmatprep.subr.mxu0 0.0
    %212 = vmatpush1.msra.mxu0 %v43
    %213 = vmatprep.subr.mxu0 0.0
    %214 = vmatpush1.msra.mxu0 %v42
    %215 = vmatprep.subr.mxu0 0.0
    %216 = vmatpush1.msra.mxu0 %v41
    %217 = vmatprep.subr.mxu0 0.0
    %218 = vmatpush1.msra.mxu0 %v40
    %219 = vmatprep.subr.mxu0 0.0
    %220 = vmatpush1.msra.mxu0 %v39
    %221 = vmatprep.subr.mxu0 0.0
    %222 = vmatpush1.msra.mxu0 %v38
    %223 = vmatprep.subr.mxu0 0.0
    %224 = vmatpush1.msra.mxu0 %v37
    %225 = vmatprep.subr.mxu0 0.0
    %226 = vmatpush1.msra.mxu0 %v36
    %227 = vmatprep.subr.mxu0 0.0
    %228 = vmatpush1.msra.mxu0 %v35
    %229 = vmatprep.subr.mxu0 0.0
    %230 = vmatpush1.msra.mxu0 %v34
    %231 = vmatprep.subr.mxu0 0.0
    %232 = vmatpush1.msra.mxu0 %v33
    %233 = vmatprep.subr.mxu0 0.0
    %234 = vmatpush1.msra.mxu0 %v32
    %235 = vmatprep.subr.mxu0 0.0
    %236 = vmatpush1.msra.mxu0 %v31
    %237 = vmatprep.subr.mxu0 0.0
    %238 = vmatpush1.msra.mxu0 %v30
    %239 = vmatprep.subr.mxu0 0.0
    %240 = vmatpush2.msra.mxu0 0.0
    %241 = vmatprep.subr.mxu0 0.0
    %242 = vmatpush2.msra.mxu0 0.0
    %243 = vmatprep.subr.mxu0 0.0
    %244 = vmatpush2.msra.mxu0 0.0
    %245 = vmatprep.subr.mxu0 0.0
    %246 = vmatpush2.msra.mxu0 0.0
    %247 = vmatprep.subr.mxu0 0.0
    %248 = vmatpush2.msra.mxu0 0.0
    %249 = vmatprep.subr.mxu0 0.0
    %250 = vmatpush2.msra.mxu0 0.0
    %251 = vmatprep.subr.mxu0 0.0
    %252 = vmatpush2.msra.mxu0 0.0
    %253 = vmatprep.subr.mxu0 0.0
    %254 = vmatpush2.msra.mxu0 0.0
    %255 = vmatprep.subr.mxu0 0.0
    %256 = vmatpush2.msra.mxu0 0.0
    %257 = vmatprep.subr.mxu0 0.0
    %258 = vmatpush2.msra.mxu0 0.0
    %259 = vmatprep.subr.mxu0 0.0
    %260 = vmatpush2.msra.mxu0 0.0
    %261 = vmatprep.subr.mxu0 0.0
    %262 = vmatpush2.msra.mxu0 0.0
    %263 = vmatprep.subr.mxu0 0.0
    %264 = vmatpush2.msra.mxu0 0.0
    %265 = vmatprep.subr.mxu0 0.0
    %266 = vmatpush2.msra.mxu0 0.0
    %267 = vmatprep.subr.mxu0 0.0
    %268 = vmatpush2.msra.mxu0 0.0
    %269 = vmatprep.subr.mxu0 0.0
    %270 = vmatpush2.msra.mxu0 0.0
    %271 = vmatprep.mubr.f32.mxu0 0.0
    %272 = vmatmul.mubr.f32.gmra.mxu0 %v206
    %v273 = vpop.f32.mrf.mxu0
    %v274 = vadd.f32 %v168, %v273
    %v275 = vpop.f32.mrf.mxu0
    %276 = vdwg.mxu0
    %v277 = vmax.f32 %v274, 0.0
    %278 = vmatprep.subr.mxu0 0.0
    %279 = vmatpush1.msra.mxu0 %v45
    %280 = vmatprep.subr.mxu0 0.0
    %281 = vmatpush1.msra.mxu0 %v44
    %282 = vmatprep.subr.mxu0 0.0
    %283 = vmatpush1.msra.mxu0 %v43
    %284 = vmatprep.subr.mxu0 0.0
    %285 = vmatpush1.msra.mxu0 %v42
    %286 = vmatprep.subr.mxu0 0.0
    %287 = vmatpush1.msra.mxu0 %v41
    %288 = vmatprep.subr.mxu0 0.0
    %289 = vmatpush1.msra.mxu0 %v40
    %290 = vmatprep.subr.mxu0 0.0
    %291 = vmatpush1.msra.mxu0 %v39
    %292 = vmatprep.subr.mxu0 0.0
    %293 = vmatpush1.msra.mxu0 %v38
    %294 = vmatprep.subr.mxu0 0.0
    %295 = vmatpush1.msra.mxu0 %v37
    %296 = vmatprep.subr.mxu0 0.0
    %297 = vmatpush1.msra.mxu0 %v36
    %298 = vmatprep.subr.mxu0 0.0
    %299 = vmatpush1.msra.mxu0 %v35
    %300 = vmatprep.subr.mxu0 0.0
    %301 = vmatpush1.msra.mxu0 %v34
    %302 = vmatprep.subr.mxu0 0.0
    %303 = vmatpush1.msra.mxu0 %v33
    %304 = vmatprep.subr.mxu0 0.0
    %305 = vmatpush1.msra.mxu0 %v32
    %306 = vmatprep.subr.mxu0 0.0
    %307 = vmatpush1.msra.mxu0 %v31
    %308 = vmatprep.subr.mxu0 0.0
    %309 = vmatpush1.msra.mxu0 %v30
    %310 = vmatprep.subr.mxu0 0.0
    %311 = vmatpush2.msra.mxu0 0.0
    %312 = vmatprep.subr.mxu0 0.0
    %313 = vmatpush2.msra.mxu0 0.0
    %314 = vmatprep.subr.mxu0 0.0
    %315 = vmatpush2.msra.mxu0 0.0
    %316 = vmatprep.subr.mxu0 0.0
    %317 = vmatpush2.msra.mxu0 0.0
    %318 = vmatprep.subr.mxu0 0.0
    %319 = vmatpush2.msra.mxu0 0.0
    %320 = vmatprep.subr.mxu0 0.0
    %321 = vmatpush2.msra.mxu0 0.0
    %322 = vmatprep.subr.mxu0 0.0
    %323 = vmatpush2.msra.mxu0 0.0
    %324 = vmatprep.subr.mxu0 0.0
    %325 = vmatpush2.msra.mxu0 0.0
    %326 = vmatprep.subr.mxu0 0.0
    %327 = vmatpush2.msra.mxu0 0.0
    %328 = vmatprep.subr.mxu0 0.0
    %329 = vmatpush2.msra.mxu0 0.0
    %330 = vmatprep.subr.mxu0 0.0
    %331 = vmatpush2.msra.mxu0 0.0
    %332 = vmatprep.subr.mxu0 0.0
    %333 = vmatpush2.msra.mxu0 0.0
    %334 = vmatprep.subr.mxu0 0.0
    %335 = vmatpush2.msra.mxu0 0.0
    %336 = vmatprep.subr.mxu0 0.0
    %337 = vmatpush2.msra.mxu0 0.0
    %338 = vmatprep.subr.mxu0 0.0
    %339 = vmatpush2.msra.mxu0 0.0
    %340 = vmatprep.subr.mxu0 0.0
    %341 = vmatpush2.msra.mxu0 0.0
    %342 = vmatprep.mubr.f32.mxu0 0.0
    %343 = vmatmul.mubr.f32.gmra.mxu0 %v277
    %v344 = vpop.f32.mrf.mxu0
    %v345 = vadd.f32 %v173, %v344
    %v346 = vpop.f32.mrf.mxu0
    %347 = vdwg.mxu0
    %v348 = vmax.f32 %v345, 0.0
    %349 = vmatprep.subr.mxu0 0.0
    %350 = vmatpush1.msra.mxu0 %v45
    %351 = vmatprep.subr.mxu0 0.0
    %352 = vmatpush1.msra.mxu0 %v44
    %353 = vmatprep.subr.mxu0 0.0
    %354 = vmatpush1.msra.mxu0 %v43
    %355 = vmatprep.subr.mxu0 0.0
    %356 = vmatpush1.msra.mxu0 %v42
    %357 = vmatprep.subr.mxu0 0.0
    %358 = vmatpush1.msra.mxu0 %v41
    %359 = vmatprep.subr.mxu0 0.0
    %360 = vmatpush1.msra.mxu0 %v40
    %361 = vmatprep.subr.mxu0 0.0
    %362 = vmatpush1.msra.mxu0 %v39
    %363 = vmatprep.subr.mxu0 0.0
    %364 = vmatpush1.msra.mxu0 %v38
    %365 = vmatprep.subr.mxu0 0.0
    %366 = vmatpush1.msra.mxu0 %v37
    %367 = vmatprep.subr.mxu0 0.0
    %368 = vmatpush1.msra.mxu0 %v36
    %369 = vmatprep.subr.mxu0 0.0
    %370 = vmatpush1.msra.mxu0 %v35
    %371 = vmatprep.subr.mxu0 0.0
    %372 = vmatpush1.msra.mxu0 %v34
    %373 = vmatprep.subr.mxu0 0.0
    %374 = vmatpush1.msra.mxu0 %v33
    %375 = vmatprep.subr.mxu0 0.0
    %376 = vmatpush1.msra.mxu0 %v32
    %377 = vmatprep.subr.mxu0 0.0
    %378 = vmatpush1.msra.mxu0 %v31
    %379 = vmatprep.subr.mxu0 0.0
    %380 = vmatpush1.msra.mxu0 %v30
    %381 = vmatprep.subr.mxu0 0.0
    %382 = vmatpush2.msra.mxu0 0.0
    %383 = vmatprep.subr.mxu0 0.0
    %384 = vmatpush2.msra.mxu0 0.0
    %385 = vmatprep.subr.mxu0 0.0
    %386 = vmatpush2.msra.mxu0 0.0
    %387 = vmatprep.subr.mxu0 0.0
    %388 = vmatpush2.msra.mxu0 0.0
    %389 = vmatprep.subr.mxu0 0.0
    %390 = vmatpush2.msra.mxu0 0.0
    %391 = vmatprep.subr.mxu0 0.0
    %392 = vmatpush2.msra.mxu0 0.0
    %393 = vmatprep.subr.mxu0 0.0
    %394 = vmatpush2.msra.mxu0 0.0
    %395 = vmatprep.subr.mxu0 0.0
    %396 = vmatpush2.msra.mxu0 0.0
    %397 = vmatprep.subr.mxu0 0.0
    %398 = vmatpush2.msra.mxu0 0.0
    %399 = vmatprep.subr.mxu0 0.0
    %400 = vmatpush2.msra.mxu0 0.0
    %401 = vmatprep.subr.mxu0 0.0
    %402 = vmatpush2.msra.mxu0 0.0
    %403 = vmatprep.subr.mxu0 0.0
    %404 = vmatpush2.msra.mxu0 0.0
    %405 = vmatprep.subr.mxu0 0.0
    %406 = vmatpush2.msra.mxu0 0.0
    %407 = vmatprep.subr.mxu0 0.0
    %408 = vmatpush2.msra.mxu0 0.0
    %409 = vmatprep.subr.mxu0 0.0
    %410 = vmatpush2.msra.mxu0 0.0
    %411 = vmatprep.subr.mxu0 0.0
    %412 = vmatpush2.msra.mxu0 0.0
    %413 = vmatprep.mubr.f32.mxu0 0.0
    %414 = vmatmul.mubr.f32.gmra.mxu0 %v348
    %v415 = vpop.f32.mrf.mxu0
    %v416 = vadd.f32 %v178, %v415
    %v417 = vpop.f32.mrf.mxu0
    %418 = vdwg.mxu0
    %v419 = vmax.f32 %v416, 0.0
    %420 = vmatprep.subr.mxu0 0.0
    %421 = vmatpush1.msra.mxu0 %v45
    %422 = vmatprep.subr.mxu0 0.0
    %423 = vmatpush1.msra.mxu0 %v44
    %424 = vmatprep.subr.mxu0 0.0
    %425 = vmatpush1.msra.mxu0 %v43
    %426 = vmatprep.subr.mxu0 0.0
    %427 = vmatpush1.msra.mxu0 %v42
    %428 = vmatprep.subr.mxu0 0.0
    %429 = vmatpush1.msra.mxu0 %v41
    %430 = vmatprep.subr.mxu0 0.0
    %431 = vmatpush1.msra.mxu0 %v40
    %432 = vmatprep.subr.mxu0 0.0
    %433 = vmatpush1.msra.mxu0 %v39
    %434 = vmatprep.subr.mxu0 0.0
    %435 = vmatpush1.msra.mxu0 %v38
    %436 = vmatprep.subr.mxu0 0.0
    %437 = vmatpush1.msra.mxu0 %v37
    %438 = vmatprep.subr.mxu0 0.0
    %439 = vmatpush1.msra.mxu0 %v36
    %440 = vmatprep.subr.mxu0 0.0
    %441 = vmatpush1.msra.mxu0 %v35
    %442 = vmatprep.subr.mxu0 0.0
    %443 = vmatpush1.msra.mxu0 %v34
    %444 = vmatprep.subr.mxu0 0.0
    %445 = vmatpush1.msra.mxu0 %v33
    %446 = vmatprep.subr.mxu0 0.0
    %447 = vmatpush1.msra.mxu0 %v32
    %448 = vmatprep.subr.mxu0 0.0
    %449 = vmatpush1.msra.mxu0 %v31
    %450 = vmatprep.subr.mxu0 0.0
    %451 = vmatpush1.msra.mxu0 %v30
    %452 = vmatprep.subr.mxu0 0.0
    %453 = vmatpush2.msra.mxu0 0.0
    %454 = vmatprep.subr.mxu0 0.0
    %455 = vmatpush2.msra.mxu0 0.0
    %456 = vmatprep.subr.mxu0 0.0
    %457 = vmatpush2.msra.mxu0 0.0
    %458 = vmatprep.subr.mxu0 0.0
    %459 = vmatpush2.msra.mxu0 0.0
    %460 = vmatprep.subr.mxu0 0.0
    %461 = vmatpush2.msra.mxu0 0.0
    %462 = vmatprep.subr.mxu0 0.0
    %463 = vmatpush2.msra.mxu0 0.0
    %464 = vmatprep.subr.mxu0 0.0
    %465 = vmatpush2.msra.mxu0 0.0
    %466 = vmatprep.subr.mxu0 0.0
    %467 = vmatpush2.msra.mxu0 0.0
    %468 = vmatprep.subr.mxu0 0.0
    %469 = vmatpush2.msra.mxu0 0.0
    %470 = vmatprep.subr.mxu0 0.0
    %471 = vmatpush2.msra.mxu0 0.0
    %472 = vmatprep.subr.mxu0 0.0
    %473 = vmatpush2.msra.mxu0 0.0
    %474 = vmatprep.subr.mxu0 0.0
    %475 = vmatpush2.msra.mxu0 0.0
    %476 = vmatprep.subr.mxu0 0.0
    %477 = vmatpush2.msra.mxu0 0.0
    %478 = vmatprep.subr.mxu0 0.0
    %479 = vmatpush2.msra.mxu0 0.0
    %480 = vmatprep.subr.mxu0 0.0
    %481 = vmatpush2.msra.mxu0 0.0
    %482 = vmatprep.subr.mxu0 0.0
    %483 = vmatpush2.msra.mxu0 0.0
    %484 = vmatprep.mubr.f32.mxu0 0.0
    %485 = vmatmul.mubr.f32.gmra.mxu0 %v419
    %v486 = vpop.f32.mrf.mxu0
    %v487 = vadd.f32 %v183, %v486
    %v488 = vpop.f32.mrf.mxu0
    %489 = vdwg.mxu0
    %v490 = vmax.f32 %v487, 0.0
    %491 = vmatprep.subr.mxu0 0.0
    %492 = vmatpush1.msra.mxu0 %v45
    %493 = vmatprep.subr.mxu0 0.0
    %494 = vmatpush1.msra.mxu0 %v44
    %495 = vmatprep.subr.mxu0 0.0
    %496 = vmatpush1.msra.mxu0 %v43
    %497 = vmatprep.subr.mxu0 0.0
    %498 = vmatpush1.msra.mxu0 %v42
    %499 = vmatprep.subr.mxu0 0.0
    %500 = vmatpush1.msra.mxu0 %v41
    %501 = vmatprep.subr.mxu0 0.0
    %502 = vmatpush1.msra.mxu0 %v40
    %503 = vmatprep.subr.mxu0 0.0
    %504 = vmatpush1.msra.mxu0 %v39
    %505 = vmatprep.subr.mxu0 0.0
    %506 = vmatpush1.msra.mxu0 %v38
    %507 = vmatprep.subr.mxu0 0.0
    %508 = vmatpush1.msra.mxu0 %v37
    %509 = vmatprep.subr.mxu0 0.0
    %510 = vmatpush1.msra.mxu0 %v36
    %511 = vmatprep.subr.mxu0 0.0
    %512 = vmatpush1.msra.mxu0 %v35
    %513 = vmatprep.subr.mxu0 0.0
    %514 = vmatpush1.msra.mxu0 %v34
    %515 = vmatprep.subr.mxu0 0.0
    %516 = vmatpush1.msra.mxu0 %v33
    %517 = vmatprep.subr.mxu0 0.0
    %518 = vmatpush1.msra.mxu0 %v32
    %519 = vmatprep.subr.mxu0 0.0
    %520 = vmatpush1.msra.mxu0 %v31
    %521 = vmatprep.subr.mxu0 0.0
    %522 = vmatpush1.msra.mxu0 %v30
    %523 = vmatprep.subr.mxu0 0.0
    %524 = vmatpush2.msra.mxu0 0.0
    %525 = vmatprep.subr.mxu0 0.0
    %526 = vmatpush2.msra.mxu0 0.0
    %527 = vmatprep.subr.mxu0 0.0
    %528 = vmatpush2.msra.mxu0 0.0
    %529 = vmatprep.subr.mxu0 0.0
    %530 = vmatpush2.msra.mxu0 0.0
    %531 = vmatprep.subr.mxu0 0.0
    %532 = vmatpush2.msra.mxu0 0.0
    %533 = vmatprep.subr.mxu0 0.0
    %534 = vmatpush2.msra.mxu0 0.0
    %535 = vmatprep.subr.mxu0 0.0
    %536 = vmatpush2.msra.mxu0 0.0
    %537 = vmatprep.subr.mxu0 0.0
    %538 = vmatpush2.msra.mxu0 0.0
    %539 = vmatprep.subr.mxu0 0.0
    %540 = vmatpush2.msra.mxu0 0.0
    %541 = vmatprep.subr.mxu0 0.0
    %542 = vmatpush2.msra.mxu0 0.0
    %543 = vmatprep.subr.mxu0 0.0
    %544 = vmatpush2.msra.mxu0 0.0
    %545 = vmatprep.subr.mxu0 0.0
    %546 = vmatpush2.msra.mxu0 0.0
    %547 = vmatprep.subr.mxu0 0.0
    %548 = vmatpush2.msra.mxu0 0.0
    %549 = vmatprep.subr.mxu0 0.0
    %550 = vmatpush2.msra.mxu0 0.0
    %551 = vmatprep.subr.mxu0 0.0
    %552 = vmatpush2.msra.mxu0 0.0
    %553 = vmatprep.subr.mxu0 0.0
    %554 = vmatpush2.msra.mxu0 0.0
    %555 = vmatprep.mubr.f32.mxu0 0.0
    %556 = vmatmul.mubr.f32.gmra.mxu0 %v490
    %v557 = vpop.f32.mrf.mxu0
    %v558 = vadd.f32 %v188, %v557
    %v559 = vpop.f32.mrf.mxu0
    %560 = vdwg.mxu0
    %v561 = vmax.f32 %v558, 0.0
    %562 = vmatprep.subr.mxu0 0.0
    %563 = vmatpush1.msra.mxu0 %v45
    %564 = vmatprep.subr.mxu0 0.0
    %565 = vmatpush1.msra.mxu0 %v44
    %566 = vmatprep.subr.mxu0 0.0
    %567 = vmatpush1.msra.mxu0 %v43
    %568 = vmatprep.subr.mxu0 0.0
    %569 = vmatpush1.msra.mxu0 %v42
    %570 = vmatprep.subr.mxu0 0.0
    %571 = vmatpush1.msra.mxu0 %v41
    %572 = vmatprep.subr.mxu0 0.0
    %573 = vmatpush1.msra.mxu0 %v40
    %574 = vmatprep.subr.mxu0 0.0
    %575 = vmatpush1.msra.mxu0 %v39
    %576 = vmatprep.subr.mxu0 0.0
    %577 = vmatpush1.msra.mxu0 %v38
    %578 = vmatprep.subr.mxu0 0.0
    %579 = vmatpush1.msra.mxu0 %v37
    %580 = vmatprep.subr.mxu0 0.0
    %581 = vmatpush1.msra.mxu0 %v36
    %582 = vmatprep.subr.mxu0 0.0
    %583 = vmatpush1.msra.mxu0 %v35
    %584 = vmatprep.subr.mxu0 0.0
    %585 = vmatpush1.msra.mxu0 %v34
    %586 = vmatprep.subr.mxu0 0.0
    %587 = vmatpush1.msra.mxu0 %v33
    %588 = vmatprep.subr.mxu0 0.0
    %589 = vmatpush1.msra.mxu0 %v32
    %590 = vmatprep.subr.mxu0 0.0
    %591 = vmatpush1.msra.mxu0 %v31
    %592 = vmatprep.subr.mxu0 0.0
    %593 = vmatpush1.msra.mxu0 %v30
    %594 = vmatprep.subr.mxu0 0.0
    %595 = vmatpush2.msra.mxu0 0.0
    %596 = vmatprep.subr.mxu0 0.0
    %597 = vmatpush2.msra.mxu0 0.0
    %598 = vmatprep.subr.mxu0 0.0
    %599 = vmatpush2.msra.mxu0 0.0
    %600 = vmatprep.subr.mxu0 0.0
    %601 = vmatpush2.msra.mxu0 0.0
    %602 = vmatprep.subr.mxu0 0.0
    %603 = vmatpush2.msra.mxu0 0.0
    %604 = vmatprep.subr.mxu0 0.0
    %605 = vmatpush2.msra.mxu0 0.0
    %606 = vmatprep.subr.mxu0 0.0
    %607 = vmatpush2.msra.mxu0 0.0
    %608 = vmatprep.subr.mxu0 0.0
    %609 = vmatpush2.msra.mxu0 0.0
    %610 = vmatprep.subr.mxu0 0.0
    %611 = vmatpush2.msra.mxu0 0.0
    %612 = vmatprep.subr.mxu0 0.0
    %613 = vmatpush2.msra.mxu0 0.0
    %614 = vmatprep.subr.mxu0 0.0
    %615 = vmatpush2.msra.mxu0 0.0
    %616 = vmatprep.subr.mxu0 0.0
    %617 = vmatpush2.msra.mxu0 0.0
    %618 = vmatprep.subr.mxu0 0.0
    %619 = vmatpush2.msra.mxu0 0.0
    %620 = vmatprep.subr.mxu0 0.0
    %621 = vmatpush2.msra.mxu0 0.0
    %622 = vmatprep.subr.mxu0 0.0
    %623 = vmatpush2.msra.mxu0 0.0
    %624 = vmatprep.subr.mxu0 0.0
    %625 = vmatpush2.msra.mxu0 0.0
    %626 = vmatprep.mubr.f32.mxu0 0.0
    %627 = vmatmul.mubr.f32.gmra.mxu0 %v561
    %v628 = vpop.f32.mrf.mxu0
    %v629 = vadd.f32 %v193, %v628
    %v630 = vpop.f32.mrf.mxu0
    %631 = vdwg.mxu0
    %v632 = vmax.f32 %v629, 0.0
    %633 = vmatprep.subr.mxu0 0.0
    %634 = vmatpush1.msra.mxu0 %v45
    %635 = vmatprep.subr.mxu0 0.0
    %636 = vmatpush1.msra.mxu0 %v44
    %637 = vmatprep.subr.mxu0 0.0
    %638 = vmatpush1.msra.mxu0 %v43
    %639 = vmatprep.subr.mxu0 0.0
    %640 = vmatpush1.msra.mxu0 %v42
    %641 = vmatprep.subr.mxu0 0.0
    %642 = vmatpush1.msra.mxu0 %v41
    %643 = vmatprep.subr.mxu0 0.0
    %644 = vmatpush1.msra.mxu0 %v40
    %645 = vmatprep.subr.mxu0 0.0
    %646 = vmatpush1.msra.mxu0 %v39
    %647 = vmatprep.subr.mxu0 0.0
    %648 = vmatpush1.msra.mxu0 %v38
    %649 = vmatprep.subr.mxu0 0.0
    %650 = vmatpush1.msra.mxu0 %v37
    %651 = vmatprep.subr.mxu0 0.0
    %652 = vmatpush1.msra.mxu0 %v36
    %653 = vmatprep.subr.mxu0 0.0
    %654 = vmatpush1.msra.mxu0 %v35
    %655 = vmatprep.subr.mxu0 0.0
    %656 = vmatpush1.msra.mxu0 %v34
    %657 = vmatprep.subr.mxu0 0.0
    %658 = vmatpush1.msra.mxu0 %v33
    %659 = vmatprep.subr.mxu0 0.0
    %660 = vmatpush1.msra.mxu0 %v32
    %661 = vmatprep.subr.mxu0 0.0
    %662 = vmatpush1.msra.mxu0 %v31
    %663 = vmatprep.subr.mxu0 0.0
    %664 = vmatpush1.msra.mxu0 %v30
    %665 = vmatprep.subr.mxu0 0.0
    %666 = vmatpush2.msra.mxu0 0.0
    %667 = vmatprep.subr.mxu0 0.0
    %668 = vmatpush2.msra.mxu0 0.0
    %669 = vmatprep.subr.mxu0 0.0
    %670 = vmatpush2.msra.mxu0 0.0
    %671 = vmatprep.subr.mxu0 0.0
    %672 = vmatpush2.msra.mxu0 0.0
    %673 = vmatprep.subr.mxu0 0.0
    %674 = vmatpush2.msra.mxu0 0.0
    %675 = vmatprep.subr.mxu0 0.0
    %676 = vmatpush2.msra.mxu0 0.0
    %677 = vmatprep.subr.mxu0 0.0
    %678 = vmatpush2.msra.mxu0 0.0
    %679 = vmatprep.subr.mxu0 0.0
    %680 = vmatpush2.msra.mxu0 0.0
    %681 = vmatprep.subr.mxu0 0.0
    %682 = vmatpush2.msra.mxu0 0.0
    %683 = vmatprep.subr.mxu0 0.0
    %684 = vmatpush2.msra.mxu0 0.0
    %685 = vmatprep.subr.mxu0 0.0
    %686 = vmatpush2.msra.mxu0 0.0
    %687 = vmatprep.subr.mxu0 0.0
    %688 = vmatpush2.msra.mxu0 0.0
    %689 = vmatprep.subr.mxu0 0.0
    %690 = vmatpush2.msra.mxu0 0.0
    %691 = vmatprep.subr.mxu0 0.0
    %692 = vmatpush2.msra.mxu0 0.0
    %693 = vmatprep.subr.mxu0 0.0
    %694 = vmatpush2.msra.mxu0 0.0
    %695 = vmatprep.subr.mxu0 0.0
    %696 = vmatpush2.msra.mxu0 0.0
    %697 = vmatprep.mubr.f32.mxu0 0.0
    %698 = vmatmul.mubr.f32.gmra.mxu0 %v632
    %v699 = vpop.f32.mrf.mxu0
    %v700 = vadd.f32 %v198, %v699
    %v701 = vpop.f32.mrf.mxu0
    %702 = vdwg.mxu0
    %v703 = vmax.f32 %v700, 0.0
    %704 = vmatprep.subr.mxu0 0.0
    %705 = vmatpush1.msra.mxu0 %v45
    %706 = vmatprep.subr.mxu0 0.0
    %707 = vmatpush1.msra.mxu0 %v44
    %708 = vmatprep.subr.mxu0 0.0
    %709 = vmatpush1.msra.mxu0 %v43
    %710 = vmatprep.subr.mxu0 0.0
    %711 = vmatpush1.msra.mxu0 %v42
    %712 = vmatprep.subr.mxu0 0.0
    %713 = vmatpush1.msra.mxu0 %v41
    %714 = vmatprep.subr.mxu0 0.0
    %715 = vmatpush1.msra.mxu0 %v40
    %716 = vmatprep.subr.mxu0 0.0
    %717 = vmatpush1.msra.mxu0 %v39
    %718 = vmatprep.subr.mxu0 0.0
    %719 = vmatpush1.msra.mxu0 %v38
    %720 = vmatprep.subr.mxu0 0.0
    %721 = vmatpush1.msra.mxu0 %v37
    %722 = vmatprep.subr.mxu0 0.0
    %723 = vmatpush1.msra.mxu0 %v36
    %724 = vmatprep.subr.mxu0 0.0
    %725 = vmatpush1.msra.mxu0 %v35
    %726 = vmatprep.subr.mxu0 0.0
    %727 = vmatpush1.msra.mxu0 %v34
    %728 = vmatprep.subr.mxu0 0.0
    %729 = vmatpush1.msra.mxu0 %v33
    %730 = vmatprep.subr.mxu0 0.0
    %731 = vmatpush1.msra.mxu0 %v32
    %732 = vmatprep.subr.mxu0 0.0
    %733 = vmatpush1.msra.mxu0 %v31
    %734 = vmatprep.subr.mxu0 0.0
    %735 = vmatpush1.msra.mxu0 %v30
    %736 = vmatprep.subr.mxu0 0.0
    %737 = vmatpush2.msra.mxu0 0.0
    %738 = vmatprep.subr.mxu0 0.0
    %739 = vmatpush2.msra.mxu0 0.0
    %740 = vmatprep.subr.mxu0 0.0
    %741 = vmatpush2.msra.mxu0 0.0
    %742 = vmatprep.subr.mxu0 0.0
    %743 = vmatpush2.msra.mxu0 0.0
    %744 = vmatprep.subr.mxu0 0.0
    %745 = vmatpush2.msra.mxu0 0.0
    %746 = vmatprep.subr.mxu0 0.0
    %747 = vmatpush2.msra.mxu0 0.0
    %748 = vmatprep.subr.mxu0 0.0
    %749 = vmatpush2.msra.mxu0 0.0
    %750 = vmatprep.subr.mxu0 0.0
    %751 = vmatpush2.msra.mxu0 0.0
    %752 = vmatprep.subr.mxu0 0.0
    %753 = vmatpush2.msra.mxu0 0.0
    %754 = vmatprep.subr.mxu0 0.0
    %755 = vmatpush2.msra.mxu0 0.0
    %756 = vmatprep.subr.mxu0 0.0
    %757 = vmatpush2.msra.mxu0 0.0
    %758 = vmatprep.subr.mxu0 0.0
    %759 = vmatpush2.msra.mxu0 0.0
    %760 = vmatprep.subr.mxu0 0.0
    %761 = vmatpush2.msra.mxu0 0.0
    %762 = vmatprep.subr.mxu0 0.0
    %763 = vmatpush2.msra.mxu0 0.0
    %764 = vmatprep.subr.mxu0 0.0
    %765 = vmatpush2.msra.mxu0 0.0
    %766 = vmatprep.subr.mxu0 0.0
    %767 = vmatpush2.msra.mxu0 0.0
    %768 = vmatprep.mubr.f32.mxu0 0.0
    %769 = vmatmul.mubr.f32.gmra.mxu0 %v703
    %v770 = vpop.f32.mrf.mxu0
    %v771 = vadd.f32 %v203, %v770
    %v772 = vpop.f32.mrf.mxu0
    %773 = vdwg.mxu0
    %v774 = vmax.f32 %v771, 0.0
    %v775 = vlaneseq
    %v776 = vshrl.u32 %v775, 7
    %v777 = vsub.s32 0, %v776
    %v778 = vrot.slane %v63, %v777
    %779 = vmatprep.subr.mxu0 0.0
    %780 = vmatpush1.msra.mxu0 %v61
    %781 = vmatprep.subr.mxu0 0.0
    %782 = vmatpush1.msra.mxu0 %v60
    %783 = vmatprep.subr.mxu0 0.0
    %784 = vmatpush1.msra.mxu0 %v59
    %785 = vmatprep.subr.mxu0 0.0
    %786 = vmatpush1.msra.mxu0 %v58
    %787 = vmatprep.subr.mxu0 0.0
    %788 = vmatpush1.msra.mxu0 %v57
    %789 = vmatprep.subr.mxu0 0.0
    %790 = vmatpush1.msra.mxu0 %v56
    %791 = vmatprep.subr.mxu0 0.0
    %792 = vmatpush1.msra.mxu0 %v55
    %793 = vmatprep.subr.mxu0 0.0
    %794 = vmatpush1.msra.mxu0 %v54
    %795 = vmatprep.subr.mxu0 0.0
    %796 = vmatpush1.msra.mxu0 %v53
    %797 = vmatprep.subr.mxu0 0.0
    %798 = vmatpush1.msra.mxu0 %v52
    %799 = vmatprep.subr.mxu0 0.0
    %800 = vmatpush1.msra.mxu0 %v51
    %801 = vmatprep.subr.mxu0 0.0
    %802 = vmatpush1.msra.mxu0 %v50
    %803 = vmatprep.subr.mxu0 0.0
    %804 = vmatpush1.msra.mxu0 %v49
    %805 = vmatprep.subr.mxu0 0.0
    %806 = vmatpush1.msra.mxu0 %v48
    %807 = vmatprep.subr.mxu0 0.0
    %808 = vmatpush1.msra.mxu0 %v47
    %809 = vmatprep.subr.mxu0 0.0
    %810 = vmatpush1.msra.mxu0 %v46
    %811 = vmatprep.subr.mxu0 0.0
    %812 = vmatpush2.msra.mxu0 0.0
    %813 = vmatprep.subr.mxu0 0.0
    %814 = vmatpush2.msra.mxu0 0.0
    %815 = vmatprep.subr.mxu0 0.0
    %816 = vmatpush2.msra.mxu0 0.0
    %817 = vmatprep.subr.mxu0 0.0
    %818 = vmatpush2.msra.mxu0 0.0
    %819 = vmatprep.subr.mxu0 0.0
    %820 = vmatpush2.msra.mxu0 0.0
    %821 = vmatprep.subr.mxu0 0.0
    %822 = vmatpush2.msra.mxu0 0.0
    %823 = vmatprep.subr.mxu0 0.0
    %824 = vmatpush2.msra.mxu0 0.0
    %825 = vmatprep.subr.mxu0 0.0
    %826 = vmatpush2.msra.mxu0 0.0
    %827 = vmatprep.subr.mxu0 0.0
    %828 = vmatpush2.msra.mxu0 0.0
    %829 = vmatprep.subr.mxu0 0.0
    %830 = vmatpush2.msra.mxu0 0.0
    %831 = vmatprep.subr.mxu0 0.0
    %832 = vmatpush2.msra.mxu0 0.0
    %833 = vmatprep.subr.mxu0 0.0
    %834 = vmatpush2.msra.mxu0 0.0
    %835 = vmatprep.subr.mxu0 0.0
    %836 = vmatpush2.msra.mxu0 0.0
    %837 = vmatprep.subr.mxu0 0.0
    %838 = vmatpush2.msra.mxu0 0.0
    %839 = vmatprep.subr.mxu0 0.0
    %840 = vmatpush2.msra.mxu0 0.0
    %841 = vmatprep.subr.mxu0 0.0
    %842 = vmatpush2.msra.mxu0 0.0
    %843 = vmatprep.mubr.f32.mxu0 0.0
    %844 = vmatmul.mubr.f32.gmra.mxu0 %v774
    %v845 = vpop.f32.mrf.mxu0
    %v846 = vadd.f32 %v778, %v845
    %v847 = vpop.f32.mrf.mxu0
    %848 = vdwg.mxu0
    %849 = vst [vmem:[#allocation5] sm:$0xff] %v846
    // Predicated region
    $region18: #{tpu_custom_call.1} parent=1 // pred_check
      _
    $region19: #{tpu_custom_call.1} parent=1 // pred_check_branch
      %851 = sbr.rel (0) target = $region21
    $region20: #{tpu_custom_call.1} parent=1 // pred_region
      %s853 = ssub.s32 128, 128
      %854 = vsyncadd [#allocation4], %s853
      %s856 = sshll.u32 [#allocation5], 4
      %s857 = int_to_ptr.vmem [resolvable:$true] %s856
      %859 = dma.vmem_to_hbm [thread:$0]  %s857, 128, %s3, [#allocation4]
    $region21: #{tpu_custom_call.1} parent=1 // pred_fallthru
      _
    // Predicated region
    $region22: #{tpu_custom_call.1} parent=1 // pred_check
      _
    $region23: #{tpu_custom_call.1} parent=1 // pred_check_branch
      %861 = sbr.rel (0) target = $region25
    $region24: #{tpu_custom_call.1} parent=1 // pred_region
      %862 = dma.done [#allocation4], 128
    $region25: #{tpu_custom_call.1} parent=1 // pred_fallthru
      _
    %863 = vsyncpa [#allocation3], 1
    %864 = vsyncpa [#allocation4], 1

</llo_original>
